<compile_context>
chip_gen: v7x
topology: tpu7x:2x2x1
jax: 0.10.0
libtpu: 0.0.40
codegen_flags: <defaults>
</compile_context>

<pallas_src>
import jax
import jax.numpy as jnp
from jax.experimental import pallas as pl
from jax.experimental.pallas import tpu as pltpu

EPS = 1e-5


def ffn_pallas(x_nchw, w1, g1, b1, w2, g2, b2, *, tn=512):
    """x_nchw: (B, C, H, W) f32.  w1: (Cin, Chid), w2: (Chid, Cout).  Returns NCHW."""
    B, C, H, W = x_nchw.shape
    Chid = w1.shape[1]
    Cout = w2.shape[1]
    assert Cout == C, "residual add requires out_features == in_features"
    N = B * H * W

    # Lane-dense layout: NCHW -> CNHW (major-axis permute only) -> (C, N).
    x_cn = jnp.transpose(x_nchw, (1, 0, 2, 3)).reshape(C, N)

    n_tiles = pl.cdiv(N, tn)
    n_pad = n_tiles * tn
    if n_pad != N:
        x_cn = jnp.pad(x_cn, ((0, 0), (0, n_pad - N)))

    w1t = jnp.transpose(w1).astype(jnp.float32)   # (Chid, Cin)
    w2t = jnp.transpose(w2).astype(jnp.float32)   # (Cout, Chid)
    f32 = jnp.float32

    def tok_spec(c):          # tiled over the token (lane) axis
        return pl.BlockSpec((c, tn), lambda t: (0, t))

    def const_spec(shape):    # resident in VMEM for the whole grid
        return pl.BlockSpec(shape, lambda t: (0, 0))

    # ---------------- pass 1: BN1 batch statistics of h = W1^T x -------------
    def stats1_kernel(x_ref, w1t_ref, hsum_ref, hsq_ref):
        @pl.when(pl.program_id(0) == 0)
        def _():
            hsum_ref[...] = jnp.zeros_like(hsum_ref)
            hsq_ref[...] = jnp.zeros_like(hsq_ref)

        # (Chid, Cin) @ (Cin, TN) -> (Chid, TN), tokens on the lane axis.
        # Padded x columns are zero -> contribute 0 to both sums.
        h = jnp.dot(w1t_ref[...], x_ref[...], preferred_element_type=f32)
        hsum_ref[...] += jnp.sum(h, axis=-1, keepdims=True)
        hsq_ref[...] += jnp.sum(h * h, axis=-1, keepdims=True)

    hsum, hsq = pl.pallas_call(
        stats1_kernel,
        grid=(n_tiles,),
        in_specs=[tok_spec(C), const_spec((Chid, C))],
        out_specs=[const_spec((Chid, 1)), const_spec((Chid, 1))],
        out_shape=[jax.ShapeDtypeStruct((Chid, 1), f32),
                   jax.ShapeDtypeStruct((Chid, 1), f32)],
        compiler_params=pltpu.CompilerParams(dimension_semantics=("arbitrary",)),
    )(x_cn, w1t)

    m1 = hsum / N
    v1 = jnp.maximum(hsq / N - m1 * m1, 0.0)
    s1 = g1.reshape(Chid, 1) * jax.lax.rsqrt(v1 + EPS)
    t1 = b1.reshape(Chid, 1) - m1 * s1

    # --- pass 2: BN2 batch statistics of y = W2^T gelu(BN1(h)) (no y store) --
    def stats2_kernel(x_ref, w1t_ref, s1_ref, t1_ref, w2t_ref, ysum_ref, ysq_ref):
        @pl.when(pl.program_id(0) == 0)
        def _():
            ysum_ref[...] = jnp.zeros_like(ysum_ref)
            ysq_ref[...] = jnp.zeros_like(ysq_ref)

        h = jnp.dot(w1t_ref[...], x_ref[...], preferred_element_type=f32)
        h = h * s1_ref[...] + t1_ref[...]                  # BN1 (folded)
        g = jax.nn.gelu(h, approximate=False)              # exact erf GELU (torch)
        y = jnp.dot(w2t_ref[...], g, preferred_element_type=f32)
        if n_pad != N:  # static: exclude padded token columns from BN2 stats
            col = (pl.program_id(0) * tn
                   + jax.lax.broadcasted_iota(jnp.int32, (Cout, tn), 1))
            y = jnp.where(col < N, y, 0.0)
        ysum_ref[...] += jnp.sum(y, axis=-1, keepdims=True)
        ysq_ref[...] += jnp.sum(y * y, axis=-1, keepdims=True)

    ysum, ysq = pl.pallas_call(
        stats2_kernel,
        grid=(n_tiles,),
        in_specs=[tok_spec(C), const_spec((Chid, C)),
                  const_spec((Chid, 1)), const_spec((Chid, 1)),
                  const_spec((Cout, Chid))],
        out_specs=[const_spec((Cout, 1)), const_spec((Cout, 1))],
        out_shape=[jax.ShapeDtypeStruct((Cout, 1), f32),
                   jax.ShapeDtypeStruct((Cout, 1), f32)],
        compiler_params=pltpu.CompilerParams(dimension_semantics=("arbitrary",)),
    )(x_cn, w1t, s1, t1, w2t)

    m2 = ysum / N
    v2 = jnp.maximum(ysq / N - m2 * m2, 0.0)
    s2 = g2.reshape(Cout, 1) * jax.lax.rsqrt(v2 + EPS)
    t2 = b2.reshape(Cout, 1) - m2 * s2

    # ------ pass 3 (fully fused): out = x + BN2(W2^T gelu(BN1(W1^T x))) ------
    def final_kernel(x_ref, w1t_ref, s1_ref, t1_ref, w2t_ref, s2_ref, t2_ref,
                     o_ref):
        h = jnp.dot(w1t_ref[...], x_ref[...], preferred_element_type=f32)
        h = h * s1_ref[...] + t1_ref[...]
        g = jax.nn.gelu(h, approximate=False)
        y = jnp.dot(w2t_ref[...], g, preferred_element_type=f32)
        o_ref[...] = x_ref[...] + y * s2_ref[...] + t2_ref[...]

    out_cn = pl.pallas_call(
        final_kernel,
        grid=(n_tiles,),
        in_specs=[tok_spec(C), const_spec((Chid, C)),
                  const_spec((Chid, 1)), const_spec((Chid, 1)),
                  const_spec((Cout, Chid)),
                  const_spec((Cout, 1)), const_spec((Cout, 1))],
        out_specs=tok_spec(Cout),
        out_shape=jax.ShapeDtypeStruct((Cout, n_pad), f32),
        compiler_params=pltpu.CompilerParams(dimension_semantics=("parallel",)),
    )(x_cn, w1t, s1, t1, w2t, s2, t2)

    out_cn = out_cn[:, :N]
    return jnp.transpose(out_cn.reshape(C, B, H, W), (1, 0, 2, 3))


def ffn_reference(x_nchw, w1, g1, b1, w2, g2, b2):
    """Pure-JAX reference with identical (training-mode BN) semantics."""
    B, C, H, W = x_nchw.shape
    x2d = jnp.transpose(x_nchw, (0, 2, 3, 1)).reshape(-1, C)
    h = x2d @ w1
    m1 = h.mean(0, keepdims=True)
    v1 = ((h - m1) ** 2).mean(0, keepdims=True)
    h = (h - m1) / jnp.sqrt(v1 + EPS) * g1 + b1
    h = jax.nn.gelu(h, approximate=False)
    y = h @ w2
    m2 = y.mean(0, keepdims=True)
    v2 = ((y - m2) ** 2).mean(0, keepdims=True)
    y = (y - m2) / jnp.sqrt(v2 + EPS) * g2 + b2
    o = x2d + y
    return jnp.transpose(o.reshape(B, H, W, C), (0, 3, 1, 2))


if __name__ == "__main__":
    B, C, H, W = 2, 4, 16, 16
    hidden = 16  # hidden_features

    key = jax.random.PRNGKey(0)
    kx, k1, k2, kg1, kb1, kg2, kb2 = jax.random.split(key, 7)

    x = jax.random.normal(kx, (B, C, H, W), dtype=jnp.float32)

    # Conv2d 1x1 weights stored as (in, out) matmul matrices.
    w1 = jax.random.normal(k1, (C, hidden), dtype=jnp.float32) * 0.1
    w2 = jax.random.normal(k2, (hidden, C), dtype=jnp.float32) * 0.1
    # BatchNorm affine params (gamma, beta).
    g1 = 1.0 + 0.1 * jax.random.normal(kg1, (hidden,), dtype=jnp.float32)
    b1 = 0.1 * jax.random.normal(kb1, (hidden,), dtype=jnp.float32)
    g2 = 1.0 + 0.1 * jax.random.normal(kg2, (C,), dtype=jnp.float32)
    b2 = 0.1 * jax.random.normal(kb2, (C,), dtype=jnp.float32)

    ref = ffn_reference(x, w1, g1, b1, w2, g2, b2)

    # tn=128 -> 4 token tiles, no padding: exercises tiled grid + stat accumulation.
    out = ffn_pallas(x, w1, g1, b1, w2, g2, b2, tn=128)
    out = jax.block_until_ready(out)
    assert out.shape == (B, C, H, W)
    assert jnp.allclose(out, ref, atol=1e-4, rtol=1e-4), "mismatch vs reference"

    # tn=384 -> 2 token tiles with padding: exercises in-kernel pad masking of BN2 stats.
    out_pad = ffn_pallas(x, w1, g1, b1, w2, g2, b2, tn=384)
    out_pad = jax.block_until_ready(out_pad)
    assert jnp.allclose(out_pad, ref, atol=1e-4, rtol=1e-4), "mismatch (padded path)"

    print("KERNEL_OK")
</pallas_src>

<mosaic_0001>
module attributes {stable_mosaic.version = 11 : i64} {
  func.func @stats1_kernel(%arg0: i32, %arg1: memref<4x128xf32, #tpu.memory_space<vmem>>, %arg2: memref<16x4xf32, #tpu.memory_space<vmem>>, %arg3: memref<16x1xf32, #tpu.memory_space<vmem>>, %arg4: memref<16x1xf32, #tpu.memory_space<vmem>>) attributes {dimension_semantics = [#tpu.dimension_semantics<arbitrary>], iteration_bounds = array<i64: 4>, scalar_prefetch = 0 : i64, scratch_operands = 0 : i64, tpu.core_type = #tpu.core_type<tc>, window_params = [{transform_indices = @transform_0, window_bounds = array<i64: 4, 128>}, {pipeline_mode = #tpu.pipeline_mode<synchronous>, transform_indices = @transform_1, window_bounds = array<i64: 16, 4>}, {pipeline_mode = #tpu.pipeline_mode<synchronous>, transform_indices = @transform_2, window_bounds = array<i64: 16, 1>}, {pipeline_mode = #tpu.pipeline_mode<synchronous>, transform_indices = @transform_3, window_bounds = array<i64: 16, 1>}]} {
    %c0_i32 = arith.constant 0 : i32
    %0 = arith.cmpi eq, %arg0, %c0_i32 : i32
    %1 = arith.extui %0 : i1 to i32
    %c0_i32_0 = arith.constant 0 : i32
    %2 = arith.cmpi ne, %1, %c0_i32_0 : i32
    scf.if %2 {
      %cst_14 = arith.constant 0.000000e+00 : f32
      %17 = vector.broadcast %cst_14 : f32 to vector<16x1xf32>
      %c0_15 = arith.constant 0 : index
      %c0_16 = arith.constant 0 : index
      %18 = vector.load %arg3[%c0_15, %c0_16] : memref<16x1xf32, #tpu.memory_space<vmem>>, vector<16x1xf32>
      tpu.vector_store %arg3[%c0_15, %c0_16], %17 {strides = array<i32>} : memref<16x1xf32, #tpu.memory_space<vmem>>, vector<16x1xf32>,
      %cst_17 = arith.constant 0.000000e+00 : f32
      %19 = vector.broadcast %cst_17 : f32 to vector<16x1xf32>
      %c0_18 = arith.constant 0 : index
      %c0_19 = arith.constant 0 : index
      %20 = vector.load %arg4[%c0_18, %c0_19] : memref<16x1xf32, #tpu.memory_space<vmem>>, vector<16x1xf32>
      tpu.vector_store %arg4[%c0_18, %c0_19], %19 {strides = array<i32>} : memref<16x1xf32, #tpu.memory_space<vmem>>, vector<16x1xf32>,
    } else {
    }
    %c0 = arith.constant 0 : index
    %c0_1 = arith.constant 0 : index
    %3 = vector.load %arg2[%c0, %c0_1] : memref<16x4xf32, #tpu.memory_space<vmem>>, vector<16x4xf32>
    %c0_2 = arith.constant 0 : index
    %c0_3 = arith.constant 0 : index
    %4 = vector.load %arg1[%c0_2, %c0_3] : memref<4x128xf32, #tpu.memory_space<vmem>>, vector<4x128xf32>
    %cst = arith.constant dense<0.000000e+00> : vector<16x128xf32>
    %5 = tpu.matmul %3, %4, %cst {dimension_numbers = #tpu.dot_dimension_numbers<[1], [0], [0], [1], [0, 0, 1, 1], [], []>} : vector<16x4xf32>, vector<4x128xf32>, vector<16x128xf32> -> vector<16x128xf32>
    %c0_4 = arith.constant 0 : index
    %c0_5 = arith.constant 0 : index
    %6 = vector.load %arg3[%c0_4, %c0_5] : memref<16x1xf32, #tpu.memory_space<vmem>>, vector<16x1xf32>
    %cst_6 = arith.constant dense<0.000000e+00> : vector<16xf32>
    %7 = vector.multi_reduction <add>, %5, %cst_6 [1] : vector<16x128xf32> to vector<16xf32>
    %8 = vector.shape_cast %7 : vector<16xf32> to vector<16x1xf32>
    %9 = arith.addf %6, %8 : vector<16x1xf32>
    %c0_7 = arith.constant 0 : index
    %c0_8 = arith.constant 0 : index
    %10 = vector.load %arg3[%c0_7, %c0_8] : memref<16x1xf32, #tpu.memory_space<vmem>>, vector<16x1xf32>
    tpu.vector_store %arg3[%c0_7, %c0_8], %9 {strides = array<i32>} : memref<16x1xf32, #tpu.memory_space<vmem>>, vector<16x1xf32>,
    %c0_9 = arith.constant 0 : index
    %c0_10 = arith.constant 0 : index
    %11 = vector.load %arg4[%c0_9, %c0_10] : memref<16x1xf32, #tpu.memory_space<vmem>>, vector<16x1xf32>
    %12 = arith.mulf %5, %5 : vector<16x128xf32>
    %cst_11 = arith.constant dense<0.000000e+00> : vector<16xf32>
    %13 = vector.multi_reduction <add>, %12, %cst_11 [1] : vector<16x128xf32> to vector<16xf32>
    %14 = vector.shape_cast %13 : vector<16xf32> to vector<16x1xf32>
    %15 = arith.addf %11, %14 : vector<16x1xf32>
    %c0_12 = arith.constant 0 : index
    %c0_13 = arith.constant 0 : index
    %16 = vector.load %arg4[%c0_12, %c0_13] : memref<16x1xf32, #tpu.memory_space<vmem>>, vector<16x1xf32>
    tpu.vector_store %arg4[%c0_12, %c0_13], %15 {strides = array<i32>} : memref<16x1xf32, #tpu.memory_space<vmem>>, vector<16x1xf32>,
    return
  }
  func.func @transform_0(%arg0: i32) -> (i32, i32) {
    %c0_i32 = arith.constant 0 : i32
    %c0_i32_0 = arith.constant 0 : i32
    return %c0_i32, %arg0 : i32, i32
  }
  func.func @transform_1(%arg0: i32) -> (i32, i32) {
    %c0_i32 = arith.constant 0 : i32
    %c0_i32_0 = arith.constant 0 : i32
    %c0_i32_1 = arith.constant 0 : i32
    return %c0_i32, %c0_i32_0 : i32, i32
  }
  func.func @transform_2(%arg0: i32) -> (i32, i32) {
    %c0_i32 = arith.constant 0 : i32
    %c0_i32_0 = arith.constant 0 : i32
    %c0_i32_1 = arith.constant 0 : i32
    return %c0_i32, %c0_i32_0 : i32, i32
  }
  func.func @transform_3(%arg0: i32) -> (i32, i32) {
    %c0_i32 = arith.constant 0 : i32
    %c0_i32_0 = arith.constant 0 : i32
    %c0_i32_1 = arith.constant 0 : i32
    return %c0_i32, %c0_i32_0 : i32, i32
  }
}

</mosaic_0001>

<llo_original>
// kernel: tpu_custom_call.1
$region0: #{tpu_custom_call.1}
  #allocation0 [shape = 'u32[]', space=smem, size = 0x4, offset = 0x4, fixed_abs, tag = 'smem constant byte address 0x4 - core index']
  #allocation1 [shape = 'u32[144,128]{1,0:T(1,128)}', space=vmem, size = 0x12000, scoped, tag = 'internal scratch']
  %s0 = inlined_call_operand.vmem [shape: f32[4,512], index: 0, kind: input, shape index: {}]
  %s1 = inlined_call_operand.vmem [shape: f32[16,4], index: 1, kind: input, shape index: {}]
  %s2 = inlined_call_operand.vmem [shape: f32[16,1], index: 2, kind: output, shape index: {0}]
  %s3 = inlined_call_operand.vmem [shape: f32[16,1], index: 3, kind: output, shape index: {1}]
  %4 = xla_tuple %s2, %s3
  %s5 = sld [smem:[#allocation0]]
  $region53: #{tpu_custom_call.1} parent=0
    _
  %s7 = ssub.s32 1, %s5
  %s8 = scalar_select 0, %s7, %s5
  loop: start=0, step=1, limit=6
  $region2: #{tpu_custom_call.1} parent=0 // loop_pre_header
    _
  $region3: #{tpu_custom_call.1} parent=0 // loop_header
    %s10 = sphi 0, %s14
    %p11 = scmp.ge.s32.totalorder %s10, 6
    %s20 = sphi 0, %s22
    %s23 = sphi 0, %s20
    %s24 = sphi 0, %s23
    %s40 = sphi 0, %s24
    %s44 = sphi 0, %s44
    %s46 = sphi 0, %s44
    %s47 = sphi 0, %s46
    %s61 = sphi 0, %s47
    %s65 = sphi 0, %s65
    %s67 = sphi 0, %s65
    %s68 = sphi 0, %s67
    %s82 = sphi 0, %s68
    %s86 = sphi 0, %s86
    %s88 = sphi 0, %s86
    %s89 = sphi 0, %s88
    %s103 = sphi 0, %s89
  $region4: #{tpu_custom_call.1} parent=0 // loop_header_branch
    %13 = sbr.rel (%p11) target = $region8
  $region5: #{tpu_custom_call.1} parent=0 // loop_body
    %s15 = ssub.s32 %s10, 1
    %s16 = ssub.s32 %s10, 2
    %s17 = sadd.s32 %s10, 1
    %s18 = ssub.s32 %s10, %s17
    %p19 = scmp.eq.s32.totalorder %s18, 0
    %s21 = sadd.s32 %s20, 1
    %s22 = scalar_select %p19, %s20, %s21
    %p25 = pneg %p19
    %p26 = scmp.eq.s32.totalorder %s10, 3
    %p27 = por %p25, %p26
    %p28 = scmp.ne.s32.totalorder %s20, %s23
    %p29 = scmp.eq.s32.totalorder %s10, 0
    %p30 = por %p28, %p29
    %p31 = scmp.ne.s32.totalorder %s20, %s23
    %p32 = scmp.eq.s32.totalorder %s15, 3
    %p33 = por %p31, %p32
    %p34 = scmp.ne.s32.totalorder %s23, %s24
    %p35 = scmp.eq.s32.totalorder %s15, 0
    %p36 = por %p34, %p35
    %p37 = scmp.ne.s32.totalorder %s23, %s24
    %p38 = scmp.eq.s32.totalorder %s16, 3
    %p39 = por %p37, %p38
    %p41 = scmp.ne.s32.totalorder %s24, %s40
    %p42 = scmp.eq.s32.totalorder %s16, 0
    %p43 = por %p41, %p42
    %s45 = sadd.s32 %s44, 1
    %p48 = scmp.eq.s32.totalorder %s10, 3
    %p49 = scmp.ne.s32.totalorder %s44, %s46
    %p50 = scmp.eq.s32.totalorder %s10, 0
    %p51 = por %p49, %p50
    %p52 = scmp.ne.s32.totalorder %s44, %s46
    %p53 = scmp.eq.s32.totalorder %s15, 3
    %p54 = por %p52, %p53
    %p55 = scmp.ne.s32.totalorder %s46, %s47
    %p56 = scmp.eq.s32.totalorder %s15, 0
    %p57 = por %p55, %p56
    %p58 = scmp.ne.s32.totalorder %s46, %s47
    %p59 = scmp.eq.s32.totalorder %s16, 3
    %p60 = por %p58, %p59
    %p62 = scmp.ne.s32.totalorder %s47, %s61
    %p63 = scmp.eq.s32.totalorder %s16, 0
    %p64 = por %p62, %p63
    %s66 = sadd.s32 %s65, 1
    %p69 = scmp.eq.s32.totalorder %s10, 3
    %p70 = scmp.ne.s32.totalorder %s65, %s67
    %p71 = scmp.eq.s32.totalorder %s10, 0
    %p72 = por %p70, %p71
    %p73 = scmp.ne.s32.totalorder %s65, %s67
    %p74 = scmp.eq.s32.totalorder %s15, 3
    %p75 = por %p73, %p74
    %p76 = scmp.ne.s32.totalorder %s67, %s68
    %p77 = scmp.eq.s32.totalorder %s15, 0
    %p78 = por %p76, %p77
    %p79 = scmp.ne.s32.totalorder %s67, %s68
    %p80 = scmp.eq.s32.totalorder %s16, 3
    %p81 = por %p79, %p80
    %p83 = scmp.ne.s32.totalorder %s68, %s82
    %p84 = scmp.eq.s32.totalorder %s16, 0
    %p85 = por %p83, %p84
    %s87 = sadd.s32 %s86, 1
    %p90 = scmp.eq.s32.totalorder %s10, 3
    %p91 = scmp.ne.s32.totalorder %s86, %s88
    %p92 = scmp.eq.s32.totalorder %s10, 0
    %p93 = por %p91, %p92
    %p94 = scmp.ne.s32.totalorder %s86, %s88
    %p95 = scmp.eq.s32.totalorder %s15, 3
    %p96 = por %p94, %p95
    %p97 = scmp.ne.s32.totalorder %s88, %s89
    %p98 = scmp.eq.s32.totalorder %s15, 0
    %p99 = por %p97, %p98
    %p100 = scmp.ne.s32.totalorder %s88, %s89
    %p101 = scmp.eq.s32.totalorder %s16, 3
    %p102 = por %p100, %p101
    %p104 = scmp.ne.s32.totalorder %s89, %s103
    %p105 = scmp.eq.s32.totalorder %s16, 0
    %p106 = por %p104, %p105
    %p107 = scmp.le.s32.totalorder 1, %s10
    %p108 = scmp.lt.s32.totalorder %s10, 5
    %p109 = pnand %p107, %p108
    %p110 = pneg %p109
    // Predicated region
    $region9: #{tpu_custom_call.1} parent=5 // pred_check
      _
    $region10: #{tpu_custom_call.1} parent=5 // pred_check_branch
      %112 = sbr.rel (%p109) target = $region12
    $region11: #{tpu_custom_call.1} parent=5 // pred_region
      %s113 = ssub.s32 %s10, 1
      // Predicated region
      $region13: #{tpu_custom_call.1} parent=11 // pred_check
        %p114 = pneg %p57
      $region14: #{tpu_custom_call.1} parent=11 // pred_check_branch
        %116 = sbr.rel (%p114) target = $region16
      $region15: #{tpu_custom_call.1} parent=11 // pred_region
        _
      $region16: #{tpu_custom_call.1} parent=11 // pred_fallthru
        _
    $region12: #{tpu_custom_call.1} parent=5 // pred_fallthru
      _
    %p117 = scmp.lt.s32.totalorder %s10, 4
    // Predicated region
    $region17: #{tpu_custom_call.1} parent=5 // pred_check
      %p118 = pneg %p117
    $region18: #{tpu_custom_call.1} parent=5 // pred_check_branch
      %120 = sbr.rel (%p118) target = $region20
    $region19: #{tpu_custom_call.1} parent=5 // pred_region
      // Predicated region
      $region21: #{tpu_custom_call.1} parent=19 // pred_check
        %p121 = pneg %p30
      $region22: #{tpu_custom_call.1} parent=19 // pred_check_branch
        %123 = sbr.rel (%p121) target = $region24
      $region23: #{tpu_custom_call.1} parent=19 // pred_region
        %p124 = scmp.lt.s32.totalorder %s10, 3
        %s125 = scalar_select %p124, %s10, 3
        %s126 = smul.addr %s125, 4
        %s127 = scalar_lea.vmem %s0, %s126
      $region24: #{tpu_custom_call.1} parent=19 // pred_fallthru
        _
    $region20: #{tpu_custom_call.1} parent=5 // pred_fallthru
      _
    %p128 = scmp.le.s32.totalorder 1, %s10
    %p129 = scmp.lt.s32.totalorder %s10, 5
    %p130 = pnand %p128, %p129
    %p131 = pneg %p130
    // Predicated region
    $region25: #{tpu_custom_call.1} parent=5 // pred_check
      _
    $region26: #{tpu_custom_call.1} parent=5 // pred_check_branch
      %133 = sbr.rel (%p130) target = $region28
    $region27: #{tpu_custom_call.1} parent=5 // pred_region
      %s134 = ssub.s32 %s10, 1
      %p135 = scmp.lt.s32.totalorder %s15, 3
      %s136 = scalar_select %p135, %s15, 3
      %s137 = smul.addr %s136, 4
      %s138 = scalar_lea.vmem %s0, %s137
      %p139 = pneg %p36
      %p140 = pneg %p33
      %p141 = pneg %p57
      %p142 = pneg %p54
      %p143 = pneg %p78
      %p144 = pneg %p75
      %p145 = pneg %p99
      %p146 = pneg %p96
      %p147 = scmp.lt.s32.totalorder %s15, 3
      %s148 = scalar_select %p147, %s15, 3
      %s149 = smul.addr %s148, 4
      %s150 = scalar_lea.vmem %s0, %s149
      %p151 = scmp.eq.s32.totalorder %s15, 0
      // Predicated region
      $region29: #{tpu_custom_call.1} parent=27 // pred_check
        %p152 = pneg %p151
      $region30: #{tpu_custom_call.1} parent=27 // pred_check_branch
        %154 = sbr.rel (%p152) target = $region32
      $region31: #{tpu_custom_call.1} parent=27 // pred_region
        %vm155 = vcmask 7168
        %156 = vst.msk [vmem:[%s2] sm:$0xff] %vm155, 0.0
        %157 = vst.msk [vmem:[%s2 + $0x8] sm:$0xff] %vm155, 0.0
        %158 = vst.msk [vmem:[%s3] sm:$0xff] %vm155, 0.0
        %159 = vst.msk [vmem:[%s3 + $0x8] sm:$0xff] %vm155, 0.0
      $region32: #{tpu_custom_call.1} parent=27 // pred_fallthru
        _
      %v160 = vld [vmem:[%s1] sm:$0xff]
      %v161 = vld [vmem:[%s1 + $0x8] sm:$0xff]
      %v162 = vld [vmem:[%s150] sm:$0xf]
      %vm163 = vcmask 31744
      %v165 = vsel %vm163, %v160, 0
      %v168 = vsel %vm163, %v161, 0
      %vm170 = vcmask 1043456
      %v172 = vsel %vm170, %v162, 0
      %174 = vmatprep.subr.mxu0 0.0
      %175 = vmatpush1.msra.mxu0 %v172
      %176 = vmatprep.subr.mxu0 0.0
      %177 = vmatpush1.msra.mxu0 0.0
      %178 = vmatprep.subr.mxu0 0.0
      %179 = vmatpush1.msra.mxu0 0.0
      %180 = vmatprep.subr.mxu0 0.0
      %181 = vmatpush1.msra.mxu0 0.0
      %182 = vmatprep.subr.mxu0 0.0
      %183 = vmatpush1.msra.mxu0 0.0
      %184 = vmatprep.subr.mxu0 0.0
      %185 = vmatpush1.msra.mxu0 0.0
      %186 = vmatprep.subr.mxu0 0.0
      %187 = vmatpush1.msra.mxu0 0.0
      %188 = vmatprep.subr.mxu0 0.0
      %189 = vmatpush1.msra.mxu0 0.0
      %190 = vmatprep.subr.mxu0 0.0
      %191 = vmatpush1.msra.mxu0 0.0
      %192 = vmatprep.subr.mxu0 0.0
      %193 = vmatpush1.msra.mxu0 0.0
      %194 = vmatprep.subr.mxu0 0.0
      %195 = vmatpush1.msra.mxu0 0.0
      %196 = vmatprep.subr.mxu0 0.0
      %197 = vmatpush1.msra.mxu0 0.0
      %198 = vmatprep.subr.mxu0 0.0
      %199 = vmatpush1.msra.mxu0 0.0
      %200 = vmatprep.subr.mxu0 0.0
      %201 = vmatpush1.msra.mxu0 0.0
      %202 = vmatprep.subr.mxu0 0.0
      %203 = vmatpush1.msra.mxu0 0.0
      %204 = vmatprep.subr.mxu0 0.0
      %205 = vmatpush1.msra.mxu0 0.0
      %206 = vmatprep.subr.mxu0 0.0
      %207 = vmatpush1.msra.mxu0 0.0
      %208 = vmatprep.subr.mxu0 0.0
      %209 = vmatpush1.msra.mxu0 0.0
      %210 = vmatprep.subr.mxu0 0.0
      %211 = vmatpush1.msra.mxu0 0.0
      %212 = vmatprep.subr.mxu0 0.0
      %213 = vmatpush1.msra.mxu0 0.0
      %214 = vmatprep.subr.mxu0 0.0
      %215 = vmatpush1.msra.mxu0 0.0
      %216 = vmatprep.subr.mxu0 0.0
      %217 = vmatpush1.msra.mxu0 0.0
      %218 = vmatprep.subr.mxu0 0.0
      %219 = vmatpush1.msra.mxu0 0.0
      %220 = vmatprep.subr.mxu0 0.0
      %221 = vmatpush1.msra.mxu0 0.0
      %222 = vmatprep.subr.mxu0 0.0
      %223 = vmatpush1.msra.mxu0 0.0
      %224 = vmatprep.subr.mxu0 0.0
      %225 = vmatpush1.msra.mxu0 0.0
      %226 = vmatprep.subr.mxu0 0.0
      %227 = vmatpush1.msra.mxu0 0.0
      %228 = vmatprep.subr.mxu0 0.0
      %229 = vmatpush1.msra.mxu0 0.0
      %230 = vmatprep.subr.mxu0 0.0
      %231 = vmatpush1.msra.mxu0 0.0
      %232 = vmatprep.subr.mxu0 0.0
      %233 = vmatpush1.msra.mxu0 0.0
      %234 = vmatprep.subr.mxu0 0.0
      %235 = vmatpush1.msra.mxu0 0.0
      %236 = vmatprep.subr.mxu0 0.0
      %237 = vmatpush1.msra.mxu0 0.0
      %238 = vmatprep.mubr.f32.mxu0 0.0
      %239 = vmatmul.mubr.f32.gmra.mrb[0].mxu0 %v165
      %v240 = vpop.f32.mrb[0].mxu0
      %v241 = vadd.f32 0.0, %v240
      %v242 = vpop.f32.mrb[0].mxu0
      %243 = vmatprep.mubr.f32.mxu0 0.0
      %244 = vmatmul.mubr.f32.gmra.mrb[0].mxu0 %v168
      %v245 = vpop.f32.mrb[0].mxu0
      %v246 = vadd.f32 0.0, %v245
      %v247 = vpop.f32.mrb[0].mxu0
      %248 = vdwg.mxu0
      %v249 = vld [vmem:[%s2] sm:$0xff]
      %v250 = vld [vmem:[%s2 + $0x8] sm:$0xff]
      %251 = vadd.xlane.f32.xlu0 %v241
      %v252 = vpop.xlane.xlu0 %251
      %253 = vadd.xlane.f32.xlu0 %v246
      %v254 = vpop.xlane.xlu0 %253
      %v255 = vadd.f32 %v249, %v252
      %v256 = vadd.f32 %v250, %v254
      %vm257 = vcmask 7168
      %258 = vst.msk [vmem:[%s2] sm:$0xff] %vm257, %v255
      %259 = vst.msk [vmem:[%s2 + $0x8] sm:$0xff] %vm257, %v256
      %v260 = vld [vmem:[%s3] sm:$0xff]
      %v261 = vld [vmem:[%s3 + $0x8] sm:$0xff]
      %v262 = vmul.f32 %v241, %v241
      %v263 = vmul.f32 %v246, %v246
      %264 = vadd.xlane.f32.xlu0 %v262
      %v265 = vpop.xlane.xlu0 %264
      %266 = vadd.xlane.f32.xlu0 %v263
      %v267 = vpop.xlane.xlu0 %266
      %v268 = vadd.f32 %v260, %v265
      %v269 = vadd.f32 %v261, %v267
      %270 = vst.msk [vmem:[%s3] sm:$0xff] %vm257, %v268
      %271 = vst.msk [vmem:[%s3 + $0x8] sm:$0xff] %vm257, %v269
      // Predicated region
      $region33: #{tpu_custom_call.1} parent=27 // pred_check
        %p272 = pneg %p75
      $region34: #{tpu_custom_call.1} parent=27 // pred_check_branch
        %274 = sbr.rel (%p272) target = $region36
      $region35: #{tpu_custom_call.1} parent=27 // pred_region
        _
      $region36: #{tpu_custom_call.1} parent=27 // pred_fallthru
        _
      // Predicated region
      $region37: #{tpu_custom_call.1} parent=27 // pred_check
        %p275 = pneg %p96
      $region38: #{tpu_custom_call.1} parent=27 // pred_check_branch
        %277 = sbr.rel (%p275) target = $region40
      $region39: #{tpu_custom_call.1} parent=27 // pred_region
        _
      $region40: #{tpu_custom_call.1} parent=27 // pred_fallthru
        _
      // Predicated region
      $region41: #{tpu_custom_call.1} parent=27 // pred_check
        %p278 = pneg %p75
      $region42: #{tpu_custom_call.1} parent=27 // pred_check_branch
        %280 = sbr.rel (%p278) target = $region44
      $region43: #{tpu_custom_call.1} parent=27 // pred_region
        _
      $region44: #{tpu_custom_call.1} parent=27 // pred_fallthru
        _
      // Predicated region
      $region45: #{tpu_custom_call.1} parent=27 // pred_check
        %p281 = pneg %p96
      $region46: #{tpu_custom_call.1} parent=27 // pred_check_branch
        %283 = sbr.rel (%p281) target = $region48
      $region47: #{tpu_custom_call.1} parent=27 // pred_region
        _
      $region48: #{tpu_custom_call.1} parent=27 // pred_fallthru
        _
    $region28: #{tpu_custom_call.1} parent=5 // pred_fallthru
      _
    %p284 = scmp.le.s32.totalorder 2, %s10
    // Predicated region
    $region49: #{tpu_custom_call.1} parent=5 // pred_check
      %p285 = pneg %p284
    $region50: #{tpu_custom_call.1} parent=5 // pred_check_branch
      %287 = sbr.rel (%p285) target = $region52
    $region51: #{tpu_custom_call.1} parent=5 // pred_region
      %s288 = ssub.s32 %s10, 2
    $region52: #{tpu_custom_call.1} parent=5 // pred_fallthru
      _
  $region6: #{tpu_custom_call.1} parent=0 // loop_footer
    %s14 = sadd.s32 1, %s10
  $region7: #{tpu_custom_call.1} parent=0 // loop_footer_branch
    %9 = sbr.rel target = $region3
  $region8: #{tpu_custom_call.1} parent=0 // loop_exit
    _

</llo_original>
